<compile_context>
chip_gen: v5e
topology: v5e:2x2
jax: 0.10.0
libtpu: 0.0.40
codegen_flags: <defaults>
</compile_context>

<pallas_src>
import functools
import numpy as np
import jax
import jax.numpy as jnp
from jax.experimental import pallas as pl
from jax.experimental.pallas import tpu as pltpu

PAD = "<PAD>"
UNK = "<UNK>"
SOS = "<SOS>"
EOS = "<EOS>"

LANE = 128


def _round_up(x: int, m: int) -> int:
    return ((x + m - 1) // m) * m


def _pow2_bucket(x: int, minimum: int = 8) -> int:
    x = max(int(x), 1)
    return max(minimum, 1 << (x - 1).bit_length())


# ---------------------------------------------------------------------------
# Pallas kernel: one decoder step (LSTM cell + Luong attention + output proj).
# All padded dims (Hp, 4*Hp, Cp) are multiples of 128.
# ---------------------------------------------------------------------------
def _decoder_step_kernel(
    x_ref,        # [B, E]        embedded input token
    h_ref,        # [B, Hp]       previous hidden state (zero-padded lanes)
    c_ref,        # [B, Hp]       previous memory cell  (zero-padded lanes)
    enc_ref,      # [B, Np, He]   densified encoder output
    mask_ref,     # [B, Np]       additive mask (0 real node / -1e9 padding)
    wih_ref,      # [E, 4*Hp]     LSTM input->gates  (gate g at cols [g*Hp, g*Hp+H))
    whh_ref,      # [Hp, 4*Hp]    LSTM hidden->gates (same gate-strided layout)
    b_ref,        # [1, 4*Hp]     LSTM bias (b_ih + b_hh)
    wa_ref,       # [Hp, He]      Luong "general" attention projection
    woh_ref,      # [Hp, Cp]      output projection (hidden part)
    woc_ref,      # [He, Cp]      output projection (context part)
    bo_ref,       # [1, Cp]       output bias
    logits_ref,   # [B, Cp]       out (lane-dense)
    hnew_ref,     # [B, Hp]       out (lane-dense)
    cnew_ref,     # [B, Hp]       out (lane-dense)
):
    hp = h_ref.shape[-1]

    # --- LSTM cell (PyTorch gate order: i, f, g, o) --------------------------
    gates = (
        jnp.dot(x_ref[...], wih_ref[...], preferred_element_type=jnp.float32)
        + jnp.dot(h_ref[...], whh_ref[...], preferred_element_type=jnp.float32)
        + b_ref[...]
    )
    # hp is a multiple of 128 -> these lane slices are vreg/tile-aligned.
    i_g = jax.nn.sigmoid(gates[:, 0 * hp:1 * hp])
    f_g = jax.nn.sigmoid(gates[:, 1 * hp:2 * hp])
    g_g = jnp.tanh(gates[:, 2 * hp:3 * hp])
    o_g = jax.nn.sigmoid(gates[:, 3 * hp:4 * hp])
    c_new = f_g * c_ref[...] + i_g * g_g
    h_new = o_g * jnp.tanh(c_new)

    # --- Luong (general) attention over encoder nodes (MXU batched matmuls) --
    enc = enc_ref[...]                                              # [B, Np, He]
    q = jnp.dot(h_new, wa_ref[...],
                preferred_element_type=jnp.float32)                 # [B, He]
    scores = jnp.einsum("bqd,bnd->bqn", q[:, None, :], enc,
                        preferred_element_type=jnp.float32)         # [B, 1, Np]
    scores = scores + mask_ref[...][:, None, :]
    m = jnp.max(scores, axis=-1, keepdims=True)
    e = jnp.exp(scores - m)
    denom = jnp.sum(e, axis=-1, keepdims=True)
    w = e * pl.reciprocal(denom, approx=True)                       # softmax weights
    ctx = jnp.einsum("bqn,bnd->bqd", w, enc,
                     preferred_element_type=jnp.float32)[:, 0, :]   # [B, He]

    # --- Output projection on concat([h_new, ctx]) (split; no concat needed) -
    logits = (
        jnp.dot(h_new, woh_ref[...], preferred_element_type=jnp.float32)
        + jnp.dot(ctx, woc_ref[...], preferred_element_type=jnp.float32)
        + bo_ref[...]
    )

    logits_ref[...] = logits
    hnew_ref[...] = h_new
    cnew_ref[...] = c_new


# ---------------------------------------------------------------------------
# Jitted glue (embedding gather, ragged->dense scatter, mask, pallas_call, slices)
# ---------------------------------------------------------------------------
@functools.partial(jax.jit, static_argnames=("n_bucket",))
def _decoder_forward(padded_params, input_token_id, h0, c0,
                     enc_flat, batch_idx, within_idx, sizes_arr, *, n_bucket):
    emb = padded_params["embedding"]                     # [C, E] (rows unpadded)
    B, H = h0.shape
    C = emb.shape[0]
    He = padded_params["w_att"].shape[-1]
    Hp = padded_params["w_hh"].shape[0]
    Cp = padded_params["b_out"].shape[-1]

    x = jnp.take(emb, input_token_id, axis=0)            # [B, E]
    h0p = jnp.zeros((B, Hp), jnp.float32).at[:, :H].set(h0)
    c0p = jnp.zeros((B, Hp), jnp.float32).at[:, :H].set(c0)

    # ragged encoder output -> dense [B, Np, He] via device-side scatter
    # (out-of-bounds rows of the index padding are dropped by mode="drop")
    enc_pad = jnp.zeros((B, n_bucket, He), jnp.float32).at[
        batch_idx, within_idx].set(enc_flat, mode="drop")
    node_idx = jnp.arange(n_bucket, dtype=jnp.int32)[None, :]
    mask_add = jnp.where(node_idx < sizes_arr[:, None],
                         jnp.float32(0.0), jnp.float32(-1e9))

    vmem = pl.BlockSpec(memory_space=pltpu.MemorySpace.VMEM)
    inputs = (
        x, h0p, c0p, enc_pad, mask_add,
        padded_params["w_ih"], padded_params["w_hh"], padded_params["b"],
        padded_params["w_att"], padded_params["w_out_h"],
        padded_params["w_out_c"], padded_params["b_out"],
    )
    logits_p, h_new_p, c_new_p = pl.pallas_call(
        _decoder_step_kernel,
        out_shape=(
            jax.ShapeDtypeStruct((B, Cp), jnp.float32),
            jax.ShapeDtypeStruct((B, Hp), jnp.float32),
            jax.ShapeDtypeStruct((B, Hp), jnp.float32),
        ),
        in_specs=[vmem] * len(inputs),
        out_specs=(vmem, vmem, vmem),
    )(*inputs)
    return logits_p[:, :C], h_new_p[:, :H], c_new_p[:, :H]


# ---------------------------------------------------------------------------
# Decoder module (parameter container + host-side bucketing around the jit)
# ---------------------------------------------------------------------------
class AttentionDecoderPallas:
    def __init__(self, h_enc: int, h_dec: int, label_to_id: dict, key):
        self.h_enc = h_enc
        self.h_dec = h_dec
        self.label_to_id = dict(label_to_id)
        if UNK not in self.label_to_id:
            self.label_to_id[UNK] = len(self.label_to_id)
        self.out_size = len(self.label_to_id)
        self.pad_index = self.label_to_id[PAD] if PAD in self.label_to_id else -1
        self.emb_size = h_dec

        ks = jax.random.split(key, 8)
        s = 0.1
        E, H, He, C = self.emb_size, h_dec, h_enc, self.out_size
        self.params = {
            "embedding": s * jax.random.normal(ks[0], (C, E), jnp.float32),
            "w_ih": s * jax.random.normal(ks[1], (E, 4 * H), jnp.float32),
            "w_hh": s * jax.random.normal(ks[2], (H, 4 * H), jnp.float32),
            "b": s * jax.random.normal(ks[3], (1, 4 * H), jnp.float32),
            "w_att": s * jax.random.normal(ks[4], (H, He), jnp.float32),
            "w_out_h": s * jax.random.normal(ks[5], (H, C), jnp.float32),
            "w_out_c": s * jax.random.normal(ks[6], (He, C), jnp.float32),
            "b_out": s * jax.random.normal(ks[7], (1, C), jnp.float32),
        }

        # --- padded, gate-strided parameter layout for the kernel (built once) --
        Hp = _round_up(H, LANE)
        Cp = _round_up(C, LANE)
        self.h_pad, self.c_pad = Hp, Cp

        def pad2(a, rows, cols):
            return jnp.zeros((rows, cols), jnp.float32).at[
                :a.shape[0], :a.shape[1]].set(a)

        def gate_strided(w, rows):
            out = jnp.zeros((rows, 4 * Hp), jnp.float32)
            for g in range(4):
                out = out.at[:w.shape[0], g * Hp:g * Hp + H].set(
                    w[:, g * H:(g + 1) * H])
            return out

        raw = self.params
        self.padded_params = {
            "embedding": raw["embedding"],
            "w_ih": gate_strided(raw["w_ih"], E),
            "w_hh": gate_strided(raw["w_hh"], Hp),
            "b": gate_strided(raw["b"], 1),
            "w_att": pad2(raw["w_att"], Hp, He),
            "w_out_h": pad2(raw["w_out_h"], Hp, Cp),
            "w_out_c": pad2(raw["w_out_c"], He, Cp),
            "b_out": pad2(raw["b_out"], 1, Cp),
        }

    def convert_labels(self, labels):
        unk = self.label_to_id[UNK]
        return jnp.asarray([self.label_to_id.get(l, unk) for l in labels], jnp.int32)

    # ------------------------------------------------------------------
    def forward(self, input_token_id, root_hidden_states, root_memory_cells,
                encoder_output, tree_sizes):
        sizes = [int(s) for s in tree_sizes]
        B = len(sizes)
        total = int(sum(sizes))
        # TODO(synk): a tree_size of 0 makes its softmax uniform over zero-padded
        # rows (context -> 0); guard upstream if that can occur.

        # power-of-two buckets -> a handful of compilations, not one per tree size
        n_bucket = _pow2_bucket(max(sizes) if sizes else 1, 8)
        t_bucket = _pow2_bucket(total, 8)

        # tiny host-side index vectors (shapes depend only on the buckets)
        batch_idx = np.full((t_bucket,), B, np.int32)      # B == out-of-bounds -> dropped
        within_idx = np.zeros((t_bucket,), np.int32)
        if total:
            batch_idx[:total] = np.repeat(np.arange(B, dtype=np.int32), sizes)
            within_idx[:total] = np.concatenate(
                [np.arange(s, dtype=np.int32) for s in sizes])

        enc_flat = jnp.zeros((t_bucket, self.h_enc), jnp.float32).at[:total].set(
            jnp.asarray(encoder_output, jnp.float32))

        logits, h_new, c_new = _decoder_forward(
            self.padded_params,
            jnp.asarray(input_token_id, jnp.int32),
            jnp.asarray(root_hidden_states[0], jnp.float32),
            jnp.asarray(root_memory_cells[0], jnp.float32),
            enc_flat,
            jnp.asarray(batch_idx), jnp.asarray(within_idx),
            jnp.asarray(sizes, jnp.int32),
            n_bucket=n_bucket,
        )
        # match the PyTorch interface: hidden/cell carry the leading [1, ...] dim
        return logits, h_new[None], c_new[None]

    # pure-JAX reference (unpadded params) for verification
    def _forward_ref(self, input_token_id, root_hidden_states, root_memory_cells,
                     encoder_output, tree_sizes):
        p = self.params
        H = self.h_dec
        x = p["embedding"][input_token_id]
        h = root_hidden_states[0]
        c = root_memory_cells[0]
        gates = x @ p["w_ih"] + h @ p["w_hh"] + p["b"]
        i_g = jax.nn.sigmoid(gates[:, :H])
        f_g = jax.nn.sigmoid(gates[:, H:2 * H])
        g_g = jnp.tanh(gates[:, 2 * H:3 * H])
        o_g = jax.nn.sigmoid(gates[:, 3 * H:])
        c_new = f_g * c + i_g * g_g
        h_new = o_g * jnp.tanh(c_new)

        sizes = np.asarray(tree_sizes)
        offsets = np.concatenate([[0], np.cumsum(sizes)])
        q = h_new @ p["w_att"]
        ctxs = []
        for b in range(len(sizes)):
            enc_b = encoder_output[offsets[b]: offsets[b + 1]]      # [n_b, He]
            sc = enc_b @ q[b]                                       # [n_b]
            w = jax.nn.softmax(sc)
            ctxs.append(w @ enc_b)
        ctx = jnp.stack(ctxs, axis=0)
        logits = h_new @ p["w_out_h"] + ctx @ p["w_out_c"] + p["b_out"]
        return logits, h_new[None], c_new[None]


# ---------------------------------------------------------------------------
if __name__ == "__main__":
    key = jax.random.PRNGKey(0)
    k_dec, k_h, k_c, k_enc = jax.random.split(key, 4)

    label_to_id = {PAD: 0, SOS: 1, EOS: 2, "add": 3, "get": 4, "set": 5}
    h_enc, h_dec = 32, 32
    batch = 2
    tree_sizes = [5, 3]
    total_nodes = sum(tree_sizes)

    decoder = AttentionDecoderPallas(h_enc, h_dec, label_to_id, k_dec)

    input_token_id = jnp.asarray([label_to_id[SOS], label_to_id["add"]], jnp.int32)
    root_hidden_states = jax.random.normal(k_h, (1, batch, h_dec), jnp.float32)
    root_memory_cells = jax.random.normal(k_c, (1, batch, h_dec), jnp.float32)
    encoder_output = jax.random.normal(k_enc, (total_nodes, h_enc), jnp.float32)

    logits, new_h, new_c = decoder.forward(
        input_token_id, root_hidden_states, root_memory_cells,
        encoder_output, tree_sizes,
    )
    jax.block_until_ready((logits, new_h, new_c))

    ref_logits, ref_h, ref_c = decoder._forward_ref(
        input_token_id, root_hidden_states, root_memory_cells,
        encoder_output, tree_sizes,
    )
    # tolerance accommodates pl.reciprocal(approx=True) in the softmax denominator
    np.testing.assert_allclose(np.asarray(logits), np.asarray(ref_logits),
                               rtol=2e-3, atol=2e-3)
    np.testing.assert_allclose(np.asarray(new_h), np.asarray(ref_h),
                               rtol=2e-3, atol=2e-3)
    np.testing.assert_allclose(np.asarray(new_c), np.asarray(ref_c),
                               rtol=2e-3, atol=2e-3)

    assert logits.shape == (batch, decoder.out_size)
    assert new_h.shape == (1, batch, h_dec) and new_c.shape == (1, batch, h_dec)
    print("KERNEL_OK")
</pallas_src>

<mosaic_0001>
module attributes {stable_mosaic.version = 11 : i64} {
  func.func @_decoder_step_kernel(%arg0: memref<2x32xf32, #tpu.memory_space<vmem>>, %arg1: memref<2x128xf32, #tpu.memory_space<vmem>>, %arg2: memref<2x128xf32, #tpu.memory_space<vmem>>, %arg3: memref<2x8x32xf32, #tpu.memory_space<vmem>>, %arg4: memref<2x8xf32, #tpu.memory_space<vmem>>, %arg5: memref<32x512xf32, #tpu.memory_space<vmem>>, %arg6: memref<128x512xf32, #tpu.memory_space<vmem>>, %arg7: memref<1x512xf32, #tpu.memory_space<vmem>>, %arg8: memref<128x32xf32, #tpu.memory_space<vmem>>, %arg9: memref<128x128xf32, #tpu.memory_space<vmem>>, %arg10: memref<32x128xf32, #tpu.memory_space<vmem>>, %arg11: memref<1x128xf32, #tpu.memory_space<vmem>>, %arg12: memref<2x128xf32, #tpu.memory_space<vmem>>, %arg13: memref<2x128xf32, #tpu.memory_space<vmem>>, %arg14: memref<2x128xf32, #tpu.memory_space<vmem>>) attributes {dimension_semantics = [], scalar_prefetch = 0 : i64, scratch_operands = 0 : i64, tpu.core_type = #tpu.core_type<tc>} {
    %c0 = arith.constant 0 : index
    %c0_0 = arith.constant 0 : index
    %0 = vector.load %arg0[%c0, %c0_0] : memref<2x32xf32, #tpu.memory_space<vmem>>, vector<2x32xf32>
    %c0_1 = arith.constant 0 : index
    %c0_2 = arith.constant 0 : index
    %1 = vector.load %arg5[%c0_1, %c0_2] : memref<32x512xf32, #tpu.memory_space<vmem>>, vector<32x512xf32>
    %cst = arith.constant dense<0.000000e+00> : vector<2x512xf32>
    %2 = tpu.matmul %0, %1, %cst {dimension_numbers = #tpu.dot_dimension_numbers<[1], [0], [0], [1], [0, 0, 1, 1], [], []>} : vector<2x32xf32>, vector<32x512xf32>, vector<2x512xf32> -> vector<2x512xf32>
    %c0_3 = arith.constant 0 : index
    %c0_4 = arith.constant 0 : index
    %3 = vector.load %arg1[%c0_3, %c0_4] : memref<2x128xf32, #tpu.memory_space<vmem>>, vector<2x128xf32>
    %c0_5 = arith.constant 0 : index
    %c0_6 = arith.constant 0 : index
    %4 = vector.load %arg6[%c0_5, %c0_6] : memref<128x512xf32, #tpu.memory_space<vmem>>, vector<128x512xf32>
    %cst_7 = arith.constant dense<0.000000e+00> : vector<2x512xf32>
    %5 = tpu.matmul %3, %4, %cst_7 {dimension_numbers = #tpu.dot_dimension_numbers<[1], [0], [0], [1], [0, 0, 1, 1], [], []>} : vector<2x128xf32>, vector<128x512xf32>, vector<2x512xf32> -> vector<2x512xf32>
    %6 = arith.addf %2, %5 : vector<2x512xf32>
    %c0_8 = arith.constant 0 : index
    %c0_9 = arith.constant 0 : index
    %7 = vector.load %arg7[%c0_8, %c0_9] : memref<1x512xf32, #tpu.memory_space<vmem>>, vector<1x512xf32>
    %8 = vector.broadcast %7 : vector<1x512xf32> to vector<2x512xf32>
    %9 = arith.addf %6, %8 : vector<2x512xf32>
    %10 = vector.extract_strided_slice %9 {offsets = [0, 0], sizes = [2, 128], strides = [1, 1]} : vector<2x512xf32> to vector<2x128xf32>
    %11 = arith.negf %10 : vector<2x128xf32>
    %12 = math.exp %11 : vector<2x128xf32>
    %cst_10 = arith.constant 1.000000e+00 : f32
    %13 = vector.broadcast %cst_10 : f32 to vector<2x128xf32>
    %14 = arith.addf %13, %12 : vector<2x128xf32>
    %15 = arith.divf %13, %14 : vector<2x128xf32>
    %16 = vector.extract_strided_slice %9 {offsets = [0, 128], sizes = [2, 128], strides = [1, 1]} : vector<2x512xf32> to vector<2x128xf32>
    %17 = arith.negf %16 : vector<2x128xf32>
    %18 = math.exp %17 : vector<2x128xf32>
    %cst_11 = arith.constant 1.000000e+00 : f32
    %19 = vector.broadcast %cst_11 : f32 to vector<2x128xf32>
    %20 = arith.addf %19, %18 : vector<2x128xf32>
    %21 = arith.divf %19, %20 : vector<2x128xf32>
    %22 = vector.extract_strided_slice %9 {offsets = [0, 256], sizes = [2, 128], strides = [1, 1]} : vector<2x512xf32> to vector<2x128xf32>
    %23 = math.tanh %22 : vector<2x128xf32>
    %24 = vector.extract_strided_slice %9 {offsets = [0, 384], sizes = [2, 128], strides = [1, 1]} : vector<2x512xf32> to vector<2x128xf32>
    %25 = arith.negf %24 : vector<2x128xf32>
    %26 = math.exp %25 : vector<2x128xf32>
    %cst_12 = arith.constant 1.000000e+00 : f32
    %27 = vector.broadcast %cst_12 : f32 to vector<2x128xf32>
    %28 = arith.addf %27, %26 : vector<2x128xf32>
    %29 = arith.divf %27, %28 : vector<2x128xf32>
    %c0_13 = arith.constant 0 : index
    %c0_14 = arith.constant 0 : index
    %30 = vector.load %arg2[%c0_13, %c0_14] : memref<2x128xf32, #tpu.memory_space<vmem>>, vector<2x128xf32>
    %31 = arith.mulf %21, %30 : vector<2x128xf32>
    %32 = arith.mulf %15, %23 : vector<2x128xf32>
    %33 = arith.addf %31, %32 : vector<2x128xf32>
    %34 = math.tanh %33 : vector<2x128xf32>
    %35 = arith.mulf %29, %34 : vector<2x128xf32>
    %c0_15 = arith.constant 0 : index
    %c0_16 = arith.constant 0 : index
    %c0_17 = arith.constant 0 : index
    %36 = vector.load %arg3[%c0_15, %c0_16, %c0_17] : memref<2x8x32xf32, #tpu.memory_space<vmem>>, vector<2x8x32xf32>
    %c0_18 = arith.constant 0 : index
    %c0_19 = arith.constant 0 : index
    %37 = vector.load %arg8[%c0_18, %c0_19] : memref<128x32xf32, #tpu.memory_space<vmem>>, vector<128x32xf32>
    %cst_20 = arith.constant dense<0.000000e+00> : vector<2x32xf32>
    %38 = tpu.matmul %35, %37, %cst_20 {dimension_numbers = #tpu.dot_dimension_numbers<[1], [0], [0], [1], [0, 0, 1, 1], [], []>} : vector<2x128xf32>, vector<128x32xf32>, vector<2x32xf32> -> vector<2x32xf32>
    %39 = vector.shape_cast %38 : vector<2x32xf32> to vector<2x1x32xf32>
    "tpu.trace_start"() <{level = 10 : i32, message = "bqd,bnd->bqn"}> : () -> ()
    %cst_21 = arith.constant dense<0.000000e+00> : vector<2x1x8xf32>
    %40 = tpu.matmul %39, %36, %cst_21 {dimension_numbers = #tpu.dot_dimension_numbers<[2], [2], [1], [1], [0, 0, 0, 1, 1, 1], [0], [0]>} : vector<2x1x32xf32>, vector<2x8x32xf32>, vector<2x1x8xf32> -> vector<2x1x8xf32>
    "tpu.trace_stop"() : () -> ()
    %c0_22 = arith.constant 0 : index
    %c0_23 = arith.constant 0 : index
    %41 = vector.load %arg4[%c0_22, %c0_23] : memref<2x8xf32, #tpu.memory_space<vmem>>, vector<2x8xf32>
    %42 = vector.shape_cast %41 : vector<2x8xf32> to vector<2x1x8xf32>
    %43 = arith.addf %40, %42 : vector<2x1x8xf32>
    %cst_24 = arith.constant dense<0xFF800000> : vector<2x1xf32>
    %44 = vector.multi_reduction <maximumf>, %43, %cst_24 [2] : vector<2x1x8xf32> to vector<2x1xf32>
    %45 = vector.shape_cast %44 : vector<2x1xf32> to vector<2x1x1xf32>
    %46 = vector.broadcast %45 : vector<2x1x1xf32> to vector<2x1x8xf32>
    %47 = arith.subf %43, %46 : vector<2x1x8xf32>
    %48 = math.exp %47 : vector<2x1x8xf32>
    %cst_25 = arith.constant dense<0.000000e+00> : vector<2x1xf32>
    %49 = vector.multi_reduction <add>, %48, %cst_25 [2] : vector<2x1x8xf32> to vector<2x1xf32>
    %50 = vector.shape_cast %49 : vector<2x1xf32> to vector<2x1x1xf32>
    %51 = tpu.reciprocal %50 {approx = true} : vector<2x1x1xf32> -> vector<2x1x1xf32>
    %52 = vector.broadcast %51 : vector<2x1x1xf32> to vector<2x1x8xf32>
    %53 = arith.mulf %48, %52 : vector<2x1x8xf32>
    "tpu.trace_start"() <{level = 10 : i32, message = "bqn,bnd->bqd"}> : () -> ()
    %cst_26 = arith.constant dense<0.000000e+00> : vector<2x1x32xf32>
    %54 = tpu.matmul %53, %36, %cst_26 {dimension_numbers = #tpu.dot_dimension_numbers<[2], [1], [1], [2], [0, 0, 0, 1, 1, 2], [0], [0]>} : vector<2x1x8xf32>, vector<2x8x32xf32>, vector<2x1x32xf32> -> vector<2x1x32xf32>
    "tpu.trace_stop"() : () -> ()
    %55 = vector.shape_cast %54 : vector<2x1x32xf32> to vector<2x32xf32>
    %c0_27 = arith.constant 0 : index
    %c0_28 = arith.constant 0 : index
    %56 = vector.load %arg9[%c0_27, %c0_28] : memref<128x128xf32, #tpu.memory_space<vmem>>, vector<128x128xf32>
    %cst_29 = arith.constant dense<0.000000e+00> : vector<2x128xf32>
    %57 = tpu.matmul %35, %56, %cst_29 {dimension_numbers = #tpu.dot_dimension_numbers<[1], [0], [0], [1], [0, 0, 1, 1], [], []>} : vector<2x128xf32>, vector<128x128xf32>, vector<2x128xf32> -> vector<2x128xf32>
    %c0_30 = arith.constant 0 : index
    %c0_31 = arith.constant 0 : index
    %58 = vector.load %arg10[%c0_30, %c0_31] : memref<32x128xf32, #tpu.memory_space<vmem>>, vector<32x128xf32>
    %cst_32 = arith.constant dense<0.000000e+00> : vector<2x128xf32>
    %59 = tpu.matmul %55, %58, %cst_32 {dimension_numbers = #tpu.dot_dimension_numbers<[1], [0], [0], [1], [0, 0, 1, 1], [], []>} : vector<2x32xf32>, vector<32x128xf32>, vector<2x128xf32> -> vector<2x128xf32>
    %60 = arith.addf %57, %59 : vector<2x128xf32>
    %c0_33 = arith.constant 0 : index
    %c0_34 = arith.constant 0 : index
    %61 = vector.load %arg11[%c0_33, %c0_34] : memref<1x128xf32, #tpu.memory_space<vmem>>, vector<1x128xf32>
    %62 = vector.broadcast %61 : vector<1x128xf32> to vector<2x128xf32>
    %63 = arith.addf %60, %62 : vector<2x128xf32>
    %c0_35 = arith.constant 0 : index
    %c0_36 = arith.constant 0 : index
    %64 = vector.load %arg12[%c0_35, %c0_36] : memref<2x128xf32, #tpu.memory_space<vmem>>, vector<2x128xf32>
    tpu.vector_store %arg12[%c0_35, %c0_36], %63 {strides = array<i32>} : memref<2x128xf32, #tpu.memory_space<vmem>>, vector<2x128xf32>,
    %c0_37 = arith.constant 0 : index
    %c0_38 = arith.constant 0 : index
    %65 = vector.load %arg13[%c0_37, %c0_38] : memref<2x128xf32, #tpu.memory_space<vmem>>, vector<2x128xf32>
    tpu.vector_store %arg13[%c0_37, %c0_38], %35 {strides = array<i32>} : memref<2x128xf32, #tpu.memory_space<vmem>>, vector<2x128xf32>,
    %c0_39 = arith.constant 0 : index
    %c0_40 = arith.constant 0 : index
    %66 = vector.load %arg14[%c0_39, %c0_40] : memref<2x128xf32, #tpu.memory_space<vmem>>, vector<2x128xf32>
    tpu.vector_store %arg14[%c0_39, %c0_40], %33 {strides = array<i32>} : memref<2x128xf32, #tpu.memory_space<vmem>>, vector<2x128xf32>,
    return
  }
}

</mosaic_0001>

<llo_original>
// kernel: _decoder_forward.1
$region0: #{_decoder_forward.1}
  #allocation0 [shape = 'u32[]', space=smem, size = 0x4, offset = 0x4, fixed_abs, tag = 'smem constant byte address 0x4 - core index']
  #allocation1 [shape = 'u32[72,128]{1,0:T(1,128)}', space=vmem, size = 0x9000, scoped, tag = 'internal scratch']
  %s0 = inlined_call_operand.vmem [shape: f32[2,32], index: 0, kind: input, shape index: {}]
  %s1 = inlined_call_operand.vmem [shape: f32[2,128], index: 1, kind: input, shape index: {}]
  %s2 = inlined_call_operand.vmem [shape: f32[2,128], index: 2, kind: input, shape index: {}]
  %s3 = inlined_call_operand.vmem [shape: f32[2,8,32], index: 3, kind: input, shape index: {}]
  %s4 = inlined_call_operand.vmem [shape: f32[2,8], index: 4, kind: input, shape index: {}]
  %s5 = inlined_call_operand.vmem [shape: f32[32,512], index: 5, kind: input, shape index: {}]
  %s6 = inlined_call_operand.hbm [shape: f32[128,512], index: 6, kind: input, shape index: {}]
  %s7 = inlined_call_operand.vmem [shape: f32[1,512], index: 7, kind: input, shape index: {}]
  %s8 = inlined_call_operand.vmem [shape: f32[128,32], index: 8, kind: input, shape index: {}]
  %s9 = inlined_call_operand.vmem [shape: f32[128,128], index: 9, kind: input, shape index: {}]
  %s10 = inlined_call_operand.vmem [shape: f32[32,128], index: 10, kind: input, shape index: {}]
  %s11 = inlined_call_operand.vmem [shape: f32[1,128], index: 11, kind: input, shape index: {}]
  %s12 = inlined_call_operand.hbm [shape: f32[2,128], index: 12, kind: output, shape index: {0}]
  %s13 = inlined_call_operand.hbm [shape: f32[2,128], index: 13, kind: output, shape index: {1}]
  %s14 = inlined_call_operand.hbm [shape: f32[2,128], index: 14, kind: output, shape index: {2}]
  %15 = xla_tuple %s12, %s13, %s14
  %s16 = sld [smem:[#allocation0]]
  $region78: #{_decoder_forward.1} parent=0
    _
  %s18 = ssub.s32 1, %s16
  %s19 = scalar_select 0, %s18, %s16
  $region1: #{_decoder_forward.1} parent=0
    #allocation2 [shape = 'u8[262144]{0}', space=vmem, size = 0x40000, scoped, tag = 'input window, operand 6, single buffered']
    #allocation3 [shape = 's32[1]{0}', space=sflag, size = 0x4, scoped, tag = 'scoped memory for _decoder_forward.1']
    #allocation4 [shape = 's32[1]{0}', space=sflag, size = 0x4, scoped, tag = 'scoped memory for _decoder_forward.1']
    #allocation5 [shape = 'u8[1024]{0}', space=vmem, size = 0x400, scoped, tag = 'output window, operand 0, single buffered']
    #allocation6 [shape = 'u8[1024]{0}', space=vmem, size = 0x400, scoped, tag = 'output window, operand 1, single buffered']
    #allocation7 [shape = 's32[1]{0}', space=sflag, size = 0x4, scoped, tag = 'scoped memory for _decoder_forward.1']
    #allocation8 [shape = 'u8[1024]{0}', space=vmem, size = 0x400, scoped, tag = 'output window, operand 2, single buffered']
    %20 = vsyncpa [#allocation3], 0
    %21 = vsyncpa [#allocation4], 0
    %22 = vsyncpa [#allocation7], 0
    // Predicated region
    $region2: #{_decoder_forward.1} parent=1 // pred_check
      _
    $region3: #{_decoder_forward.1} parent=1 // pred_check_branch
      %24 = sbr.rel (0) target = $region5
    $region4: #{_decoder_forward.1} parent=1 // pred_region
      _
    $region5: #{_decoder_forward.1} parent=1 // pred_fallthru
      _
    // Predicated region
    $region6: #{_decoder_forward.1} parent=1 // pred_check
      _
    $region7: #{_decoder_forward.1} parent=1 // pred_check_branch
      %26 = sbr.rel (0) target = $region9
    $region8: #{_decoder_forward.1} parent=1 // pred_region
      _
    $region9: #{_decoder_forward.1} parent=1 // pred_fallthru
      _
    // Predicated region
    $region10: #{_decoder_forward.1} parent=1 // pred_check
      _
    $region11: #{_decoder_forward.1} parent=1 // pred_check_branch
      %28 = sbr.rel (0) target = $region13
    $region12: #{_decoder_forward.1} parent=1 // pred_region
      _
    $region13: #{_decoder_forward.1} parent=1 // pred_fallthru
      _
    // Predicated region
    $region14: #{_decoder_forward.1} parent=1 // pred_check
      _
    $region15: #{_decoder_forward.1} parent=1 // pred_check_branch
      %30 = sbr.rel (0) target = $region17
    $region16: #{_decoder_forward.1} parent=1 // pred_region
      _
    $region17: #{_decoder_forward.1} parent=1 // pred_fallthru
      _
    // Predicated region
    $region18: #{_decoder_forward.1} parent=1 // pred_check
      _
    $region19: #{_decoder_forward.1} parent=1 // pred_check_branch
      %32 = sbr.rel (0) target = $region21
    $region20: #{_decoder_forward.1} parent=1 // pred_region
      _
    $region21: #{_decoder_forward.1} parent=1 // pred_fallthru
      _
    // Predicated region
    $region22: #{_decoder_forward.1} parent=1 // pred_check
      _
    $region23: #{_decoder_forward.1} parent=1 // pred_check_branch
      %34 = sbr.rel (0) target = $region25
    $region24: #{_decoder_forward.1} parent=1 // pred_region
      _
    $region25: #{_decoder_forward.1} parent=1 // pred_fallthru
      _
    // Predicated region
    $region26: #{_decoder_forward.1} parent=1 // pred_check
      _
    $region27: #{_decoder_forward.1} parent=1 // pred_check_branch
      %36 = sbr.rel (0) target = $region29
    $region28: #{_decoder_forward.1} parent=1 // pred_region
      %38 = vsyncadd [#allocation3], 0
      %s39 = sshll.u32 %s6, 4
      %s40 = int_to_ptr.hbm [resolvable:$true] %s39
      %s41 = sshll.u32 [#allocation2], 4
      %s42 = int_to_ptr.vmem [resolvable:$true] %s41
      %47 = dma.hbm_to_vmem [thread:$0]  %s40, 8192, %s42, [#allocation3], 512, 512, 32
    $region29: #{_decoder_forward.1} parent=1 // pred_fallthru
      _
    // Predicated region
    $region30: #{_decoder_forward.1} parent=1 // pred_check
      _
    $region31: #{_decoder_forward.1} parent=1 // pred_check_branch
      %49 = sbr.rel (0) target = $region33
    $region32: #{_decoder_forward.1} parent=1 // pred_region
      _
    $region33: #{_decoder_forward.1} parent=1 // pred_fallthru
      _
    // Predicated region
    $region34: #{_decoder_forward.1} parent=1 // pred_check
      _
    $region35: #{_decoder_forward.1} parent=1 // pred_check_branch
      %51 = sbr.rel (0) target = $region37
    $region36: #{_decoder_forward.1} parent=1 // pred_region
      _
    $region37: #{_decoder_forward.1} parent=1 // pred_fallthru
      _
    // Predicated region
    $region38: #{_decoder_forward.1} parent=1 // pred_check
      _
    $region39: #{_decoder_forward.1} parent=1 // pred_check_branch
      %53 = sbr.rel (0) target = $region41
    $region40: #{_decoder_forward.1} parent=1 // pred_region
      _
    $region41: #{_decoder_forward.1} parent=1 // pred_fallthru
      _
    // Predicated region
    $region42: #{_decoder_forward.1} parent=1 // pred_check
      _
    $region43: #{_decoder_forward.1} parent=1 // pred_check_branch
      %55 = sbr.rel (0) target = $region45
    $region44: #{_decoder_forward.1} parent=1 // pred_region
      _
    $region45: #{_decoder_forward.1} parent=1 // pred_fallthru
      _
    // Predicated region
    $region46: #{_decoder_forward.1} parent=1 // pred_check
      _
    $region47: #{_decoder_forward.1} parent=1 // pred_check_branch
      %57 = sbr.rel (0) target = $region49
    $region48: #{_decoder_forward.1} parent=1 // pred_region
      _
    $region49: #{_decoder_forward.1} parent=1 // pred_fallthru
      _
    // Predicated region
    $region50: #{_decoder_forward.1} parent=1 // pred_check
      _
    $region51: #{_decoder_forward.1} parent=1 // pred_check_branch
      %59 = sbr.rel (0) target = $region53
    $region52: #{_decoder_forward.1} parent=1 // pred_region
      %61 = dma.done [#allocation3], 8192
    $region53: #{_decoder_forward.1} parent=1 // pred_fallthru
      _
    %v62 = vld [vmem:[%s0] sm:$0x3]
    %v63 = vld [vmem:[%s5] sm:$0xff]
    %v64 = vld [vmem:[%s5 + $0x8] sm:$0xff]
    %v65 = vld [vmem:[%s5 + $0x10] sm:$0xff]
    %v66 = vld [vmem:[%s5 + $0x18] sm:$0xff]
    %v67 = vld [vmem:[%s5 + $0x20] sm:$0xff]
    %v68 = vld [vmem:[%s5 + $0x28] sm:$0xff]
    %v69 = vld [vmem:[%s5 + $0x30] sm:$0xff]
    %v70 = vld [vmem:[%s5 + $0x38] sm:$0xff]
    %v71 = vld [vmem:[%s5 + $0x40] sm:$0xff]
    %v72 = vld [vmem:[%s5 + $0x48] sm:$0xff]
    %v73 = vld [vmem:[%s5 + $0x50] sm:$0xff]
    %v74 = vld [vmem:[%s5 + $0x58] sm:$0xff]
    %v75 = vld [vmem:[%s5 + $0x60] sm:$0xff]
    %v76 = vld [vmem:[%s5 + $0x68] sm:$0xff]
    %v77 = vld [vmem:[%s5 + $0x70] sm:$0xff]
    %v78 = vld [vmem:[%s5 + $0x78] sm:$0xff]
    %v79 = vld [vmem:[%s1] sm:$0x3]
    %v80 = vld [vmem:[#allocation2] sm:$0xff]
    %v81 = vld [vmem:[#allocation2 + $0x8] sm:$0xff]
    %v82 = vld [vmem:[#allocation2 + $0x10] sm:$0xff]
    %v83 = vld [vmem:[#allocation2 + $0x18] sm:$0xff]
    %v84 = vld [vmem:[#allocation2 + $0x20] sm:$0xff]
    %v85 = vld [vmem:[#allocation2 + $0x28] sm:$0xff]
    %v86 = vld [vmem:[#allocation2 + $0x30] sm:$0xff]
    %v87 = vld [vmem:[#allocation2 + $0x38] sm:$0xff]
    %v88 = vld [vmem:[#allocation2 + $0x40] sm:$0xff]
    %v89 = vld [vmem:[#allocation2 + $0x48] sm:$0xff]
    %v90 = vld [vmem:[#allocation2 + $0x50] sm:$0xff]
    %v91 = vld [vmem:[#allocation2 + $0x58] sm:$0xff]
    %v92 = vld [vmem:[#allocation2 + $0x60] sm:$0xff]
    %v93 = vld [vmem:[#allocation2 + $0x68] sm:$0xff]
    %v94 = vld [vmem:[#allocation2 + $0x70] sm:$0xff]
    %v95 = vld [vmem:[#allocation2 + $0x78] sm:$0xff]
    %v96 = vld [vmem:[#allocation2 + $0x80] sm:$0xff]
    %v97 = vld [vmem:[#allocation2 + $0x88] sm:$0xff]
    %v98 = vld [vmem:[#allocation2 + $0x90] sm:$0xff]
    %v99 = vld [vmem:[#allocation2 + $0x98] sm:$0xff]
    %v100 = vld [vmem:[#allocation2 + $0xa0] sm:$0xff]
    %v101 = vld [vmem:[#allocation2 + $0xa8] sm:$0xff]
    %v102 = vld [vmem:[#allocation2 + $0xb0] sm:$0xff]
    %v103 = vld [vmem:[#allocation2 + $0xb8] sm:$0xff]
    %v104 = vld [vmem:[#allocation2 + $0xc0] sm:$0xff]
    %v105 = vld [vmem:[#allocation2 + $0xc8] sm:$0xff]
    %v106 = vld [vmem:[#allocation2 + $0xd0] sm:$0xff]
    %v107 = vld [vmem:[#allocation2 + $0xd8] sm:$0xff]
    %v108 = vld [vmem:[#allocation2 + $0xe0] sm:$0xff]
    %v109 = vld [vmem:[#allocation2 + $0xe8] sm:$0xff]
    %v110 = vld [vmem:[#allocation2 + $0xf0] sm:$0xff]
    %v111 = vld [vmem:[#allocation2 + $0xf8] sm:$0xff]
    %v112 = vld [vmem:[#allocation2 + $0x100] sm:$0xff]
    %v113 = vld [vmem:[#allocation2 + $0x108] sm:$0xff]
    %v114 = vld [vmem:[#allocation2 + $0x110] sm:$0xff]
    %v115 = vld [vmem:[#allocation2 + $0x118] sm:$0xff]
    %v116 = vld [vmem:[#allocation2 + $0x120] sm:$0xff]
    %v117 = vld [vmem:[#allocation2 + $0x128] sm:$0xff]
    %v118 = vld [vmem:[#allocation2 + $0x130] sm:$0xff]
    %v119 = vld [vmem:[#allocation2 + $0x138] sm:$0xff]
    %v120 = vld [vmem:[#allocation2 + $0x140] sm:$0xff]
    %v121 = vld [vmem:[#allocation2 + $0x148] sm:$0xff]
    %v122 = vld [vmem:[#allocation2 + $0x150] sm:$0xff]
    %v123 = vld [vmem:[#allocation2 + $0x158] sm:$0xff]
    %v124 = vld [vmem:[#allocation2 + $0x160] sm:$0xff]
    %v125 = vld [vmem:[#allocation2 + $0x168] sm:$0xff]
    %v126 = vld [vmem:[#allocation2 + $0x170] sm:$0xff]
    %v127 = vld [vmem:[#allocation2 + $0x178] sm:$0xff]
    %v128 = vld [vmem:[#allocation2 + $0x180] sm:$0xff]
    %v129 = vld [vmem:[#allocation2 + $0x188] sm:$0xff]
    %v130 = vld [vmem:[#allocation2 + $0x190] sm:$0xff]
    %v131 = vld [vmem:[#allocation2 + $0x198] sm:$0xff]
    %v132 = vld [vmem:[#allocation2 + $0x1a0] sm:$0xff]
    %v133 = vld [vmem:[#allocation2 + $0x1a8] sm:$0xff]
    %v134 = vld [vmem:[#allocation2 + $0x1b0] sm:$0xff]
    %v135 = vld [vmem:[#allocation2 + $0x1b8] sm:$0xff]
    %v136 = vld [vmem:[#allocation2 + $0x1c0] sm:$0xff]
    %v137 = vld [vmem:[#allocation2 + $0x1c8] sm:$0xff]
    %v138 = vld [vmem:[#allocation2 + $0x1d0] sm:$0xff]
    %v139 = vld [vmem:[#allocation2 + $0x1d8] sm:$0xff]
    %v140 = vld [vmem:[#allocation2 + $0x1e0] sm:$0xff]
    %v141 = vld [vmem:[#allocation2 + $0x1e8] sm:$0xff]
    %v142 = vld [vmem:[#allocation2 + $0x1f0] sm:$0xff]
    %v143 = vld [vmem:[#allocation2 + $0x1f8] sm:$0xff]
    %144 = vmatpush.msra.mxu0 %v140
    %145 = vmatpush.msra.mxu0 %v136
    %146 = vmatpush.msra.mxu0 %v132
    %147 = vmatpush.msra.mxu0 %v128
    %148 = vmatpush.msra.mxu0 %v124
    %149 = vmatpush.msra.mxu0 %v120
    %150 = vmatpush.msra.mxu0 %v116
    %151 = vmatpush.msra.mxu0 %v112
    %152 = vmatpush.msra.mxu0 %v108
    %153 = vmatpush.msra.mxu0 %v104
    %154 = vmatpush.msra.mxu0 %v100
    %155 = vmatpush.msra.mxu0 %v96
    %156 = vmatpush.msra.mxu0 %v92
    %157 = vmatpush.msra.mxu0 %v88
    %158 = vmatpush.msra.mxu0 %v84
    %159 = vmatpush.msra.mxu0 %v80
    %160 = vmatmul.f32.gmra.mxu0 %v79
    %v161 = vpop.f32.mrf.mxu0
    %v162 = vadd.f32 0.0, %v161
    %163 = vdwg.mxu0
    %164 = vmatpush.msra.mxu0 %v141
    %165 = vmatpush.msra.mxu0 %v137
    %166 = vmatpush.msra.mxu0 %v133
    %167 = vmatpush.msra.mxu0 %v129
    %168 = vmatpush.msra.mxu0 %v125
    %169 = vmatpush.msra.mxu0 %v121
    %170 = vmatpush.msra.mxu0 %v117
    %171 = vmatpush.msra.mxu0 %v113
    %172 = vmatpush.msra.mxu0 %v109
    %173 = vmatpush.msra.mxu0 %v105
    %174 = vmatpush.msra.mxu0 %v101
    %175 = vmatpush.msra.mxu0 %v97
    %176 = vmatpush.msra.mxu0 %v93
    %177 = vmatpush.msra.mxu0 %v89
    %178 = vmatpush.msra.mxu0 %v85
    %179 = vmatpush.msra.mxu0 %v81
    %180 = vmatmul.f32.gmra.mxu0 %v79
    %v181 = vpop.f32.mrf.mxu0
    %v182 = vadd.f32 0.0, %v181
    %183 = vdwg.mxu0
    %184 = vmatpush.msra.mxu0 %v142
    %185 = vmatpush.msra.mxu0 %v138
    %186 = vmatpush.msra.mxu0 %v134
    %187 = vmatpush.msra.mxu0 %v130
    %188 = vmatpush.msra.mxu0 %v126
    %189 = vmatpush.msra.mxu0 %v122
    %190 = vmatpush.msra.mxu0 %v118
    %191 = vmatpush.msra.mxu0 %v114
    %192 = vmatpush.msra.mxu0 %v110
    %193 = vmatpush.msra.mxu0 %v106
    %194 = vmatpush.msra.mxu0 %v102
    %195 = vmatpush.msra.mxu0 %v98
    %196 = vmatpush.msra.mxu0 %v94
    %197 = vmatpush.msra.mxu0 %v90
    %198 = vmatpush.msra.mxu0 %v86
    %199 = vmatpush.msra.mxu0 %v82
    %200 = vmatmul.f32.gmra.mxu0 %v79
    %v201 = vpop.f32.mrf.mxu0
    %v202 = vadd.f32 0.0, %v201
    %203 = vdwg.mxu0
    %204 = vmatpush.msra.mxu0 %v143
    %205 = vmatpush.msra.mxu0 %v139
    %206 = vmatpush.msra.mxu0 %v135
    %207 = vmatpush.msra.mxu0 %v131
    %208 = vmatpush.msra.mxu0 %v127
    %209 = vmatpush.msra.mxu0 %v123
    %210 = vmatpush.msra.mxu0 %v119
    %211 = vmatpush.msra.mxu0 %v115
    %212 = vmatpush.msra.mxu0 %v111
    %213 = vmatpush.msra.mxu0 %v107
    %214 = vmatpush.msra.mxu0 %v103
    %215 = vmatpush.msra.mxu0 %v99
    %216 = vmatpush.msra.mxu0 %v95
    %217 = vmatpush.msra.mxu0 %v91
    %218 = vmatpush.msra.mxu0 %v87
    %219 = vmatpush.msra.mxu0 %v83
    %220 = vmatmul.f32.gmra.mxu0 %v79
    %v221 = vpop.f32.mrf.mxu0
    %v222 = vadd.f32 0.0, %v221
    %223 = vdwg.mxu0
    %vm224 = vcmask 261120
    %v226 = vsel %vm224, %v62, 0
    %228 = vmatpush.msra.mxu0 0.0
    %229 = vmatpush.msra.mxu0 0.0
    %230 = vmatpush.msra.mxu0 0.0
    %231 = vmatpush.msra.mxu0 0.0
    %232 = vmatpush.msra.mxu0 0.0
    %233 = vmatpush.msra.mxu0 0.0
    %234 = vmatpush.msra.mxu0 0.0
    %235 = vmatpush.msra.mxu0 0.0
    %236 = vmatpush.msra.mxu0 0.0
    %237 = vmatpush.msra.mxu0 0.0
    %238 = vmatpush.msra.mxu0 0.0
    %239 = vmatpush.msra.mxu0 0.0
    %240 = vmatpush.msra.mxu0 %v75
    %241 = vmatpush.msra.mxu0 %v71
    %242 = vmatpush.msra.mxu0 %v67
    %243 = vmatpush.msra.mxu0 %v63
    %244 = vmatmul.f32.gmra.mxu0 %v226
    %v245 = vpop.f32.mrf.mxu0
    %v246 = vadd.f32 %v162, %v245
    %247 = vdwg.mxu0
    %248 = vmatpush.msra.mxu0 0.0
    %249 = vmatpush.msra.mxu0 0.0
    %250 = vmatpush.msra.mxu0 0.0
    %251 = vmatpush.msra.mxu0 0.0
    %252 = vmatpush.msra.mxu0 0.0
    %253 = vmatpush.msra.mxu0 0.0
    %254 = vmatpush.msra.mxu0 0.0
    %255 = vmatpush.msra.mxu0 0.0
    %256 = vmatpush.msra.mxu0 0.0
    %257 = vmatpush.msra.mxu0 0.0
    %258 = vmatpush.msra.mxu0 0.0
    %259 = vmatpush.msra.mxu0 0.0
    %260 = vmatpush.msra.mxu0 %v76
    %261 = vmatpush.msra.mxu0 %v72
    %262 = vmatpush.msra.mxu0 %v68
    %263 = vmatpush.msra.mxu0 %v64
    %264 = vmatmul.f32.gmra.mxu0 %v226
    %v265 = vpop.f32.mrf.mxu0
    %v266 = vadd.f32 %v182, %v265
    %267 = vdwg.mxu0
    %268 = vmatpush.msra.mxu0 0.0
    %269 = vmatpush.msra.mxu0 0.0
    %270 = vmatpush.msra.mxu0 0.0
    %271 = vmatpush.msra.mxu0 0.0
    %272 = vmatpush.msra.mxu0 0.0
    %273 = vmatpush.msra.mxu0 0.0
    %274 = vmatpush.msra.mxu0 0.0
    %275 = vmatpush.msra.mxu0 0.0
    %276 = vmatpush.msra.mxu0 0.0
    %277 = vmatpush.msra.mxu0 0.0
    %278 = vmatpush.msra.mxu0 0.0
    %279 = vmatpush.msra.mxu0 0.0
    %280 = vmatpush.msra.mxu0 %v77
    %281 = vmatpush.msra.mxu0 %v73
    %282 = vmatpush.msra.mxu0 %v69
    %283 = vmatpush.msra.mxu0 %v65
    %284 = vmatmul.f32.gmra.mxu0 %v226
    %v285 = vpop.f32.mrf.mxu0
    %v286 = vadd.f32 %v202, %v285
    %287 = vdwg.mxu0
    %288 = vmatpush.msra.mxu0 0.0
    %289 = vmatpush.msra.mxu0 0.0
    %290 = vmatpush.msra.mxu0 0.0
    %291 = vmatpush.msra.mxu0 0.0
    %292 = vmatpush.msra.mxu0 0.0
    %293 = vmatpush.msra.mxu0 0.0
    %294 = vmatpush.msra.mxu0 0.0
    %295 = vmatpush.msra.mxu0 0.0
    %296 = vmatpush.msra.mxu0 0.0
    %297 = vmatpush.msra.mxu0 0.0
    %298 = vmatpush.msra.mxu0 0.0
    %299 = vmatpush.msra.mxu0 0.0
    %300 = vmatpush.msra.mxu0 %v78
    %301 = vmatpush.msra.mxu0 %v74
    %302 = vmatpush.msra.mxu0 %v70
    %303 = vmatpush.msra.mxu0 %v66
    %304 = vmatmul.f32.gmra.mxu0 %v226
    %v305 = vpop.f32.mrf.mxu0
    %v306 = vadd.f32 %v222, %v305
    %307 = vdwg.mxu0
    %v308 = vld [vmem:[%s7] sm:$0xf]
    %v310 = vperm.slane %v308, 0
    %v311 = vperm.slane %v308, 1
    %v312 = vperm.slane %v308, 2
    %v313 = vperm.slane %v308, 3
    %v318 = vadd.f32 %v246, %v310
    %v319 = vadd.f32 %v266, %v311
    %v320 = vadd.f32 %v286, %v312
    %v321 = vadd.f32 %v306, %v313
    %v322 = vxor.u32 %v318, 2147483648
    %v323 = vmul.f32 %v322, 1.442695
    %v324 = vpow.pop %v323
    %v325 = vadd.f32 %v324, 1.0
    %v326 = vrcp.pop %v325
    %v327 = vmul.f32 %v325, %v326
    %v328 = vsub.f32 1.0, %v327
    %v329 = vmul.f32 %v326, %v328
    %v330 = vadd.f32 %v326, %v329
    %vm331 = vweird.f32 %v325
    %vm332 = vweird.f32 %v326
    %vm333 = vmor %vm331, %vm332
    %v334 = vsel %vm333, %v326, %v330
    %v335 = vand.u32 2147483647, %v325
    %vm336 = vcmp.eq.f32.partialorder %v335, 8.507059e+37
    %v337 = vand.u32 %v325, 2147483648
    %v338 = vor.u32 1.1754944e-38, %v337
    %v339 = vsel %vm336, %v338, %v334
    %v340 = vmul.f32 1.0, %v339
    %v341 = vxor.u32 %v319, 2147483648
    %v342 = vmul.f32 %v341, 1.442695
    %v343 = vpow.pop %v342
    %v344 = vadd.f32 %v343, 1.0
    %v345 = vrcp.pop %v344
    %v346 = vmul.f32 %v344, %v345
    %v347 = vsub.f32 1.0, %v346
    %v348 = vmul.f32 %v345, %v347
    %v349 = vadd.f32 %v345, %v348
    %vm350 = vweird.f32 %v344
    %vm351 = vweird.f32 %v345
    %vm352 = vmor %vm350, %vm351
    %v353 = vsel %vm352, %v345, %v349
    %v354 = vand.u32 2147483647, %v344
    %vm355 = vcmp.eq.f32.partialorder %v354, 8.507059e+37
    %v356 = vand.u32 %v344, 2147483648
    %v357 = vor.u32 1.1754944e-38, %v356
    %v358 = vsel %vm355, %v357, %v353
    %v359 = vmul.f32 1.0, %v358
    %v360 = vtanh.pop %v320
    %v361 = vxor.u32 %v321, 2147483648
    %v362 = vmul.f32 %v361, 1.442695
    %v363 = vpow.pop %v362
    %v364 = vadd.f32 %v363, 1.0
    %v365 = vrcp.pop %v364
    %v366 = vmul.f32 %v364, %v365
    %v367 = vsub.f32 1.0, %v366
    %v368 = vmul.f32 %v365, %v367
    %v369 = vadd.f32 %v365, %v368
    %vm370 = vweird.f32 %v364
    %vm371 = vweird.f32 %v365
    %vm372 = vmor %vm370, %vm371
    %v373 = vsel %vm372, %v365, %v369
    %v374 = vand.u32 2147483647, %v364
    %vm375 = vcmp.eq.f32.partialorder %v374, 8.507059e+37
    %v376 = vand.u32 %v364, 2147483648
    %v377 = vor.u32 1.1754944e-38, %v376
    %v378 = vsel %vm375, %v377, %v373
    %v379 = vmul.f32 1.0, %v378
    %v380 = vld [vmem:[%s2] sm:$0x3]
    %v381 = vmul.f32 %v359, %v380
    %v382 = vmul.f32 %v340, %v360
    %v383 = vadd.f32 %v381, %v382
    %v384 = vtanh.pop %v383
    %v385 = vmul.f32 %v379, %v384
    %v386 = vld [vmem:[%s3] sm:$0xff]
    %v387 = vld [vmem:[%s3 + $0x8] sm:$0xff]
    %v388 = vld [vmem:[%s8] sm:$0xff]
    %v389 = vld [vmem:[%s8 + $0x8] sm:$0xff]
    %v390 = vld [vmem:[%s8 + $0x10] sm:$0xff]
    %v391 = vld [vmem:[%s8 + $0x18] sm:$0xff]
    %v392 = vld [vmem:[%s8 + $0x20] sm:$0xff]
    %v393 = vld [vmem:[%s8 + $0x28] sm:$0xff]
    %v394 = vld [vmem:[%s8 + $0x30] sm:$0xff]
    %v395 = vld [vmem:[%s8 + $0x38] sm:$0xff]
    %v396 = vld [vmem:[%s8 + $0x40] sm:$0xff]
    %v397 = vld [vmem:[%s8 + $0x48] sm:$0xff]
    %v398 = vld [vmem:[%s8 + $0x50] sm:$0xff]
    %v399 = vld [vmem:[%s8 + $0x58] sm:$0xff]
    %v400 = vld [vmem:[%s8 + $0x60] sm:$0xff]
    %v401 = vld [vmem:[%s8 + $0x68] sm:$0xff]
    %v402 = vld [vmem:[%s8 + $0x70] sm:$0xff]
    %v403 = vld [vmem:[%s8 + $0x78] sm:$0xff]
    %404 = vmatpush.msra.mxu0 %v403
    %405 = vmatpush.msra.mxu0 %v402
    %406 = vmatpush.msra.mxu0 %v401
    %407 = vmatpush.msra.mxu0 %v400
    %408 = vmatpush.msra.mxu0 %v399
    %409 = vmatpush.msra.mxu0 %v398
    %410 = vmatpush.msra.mxu0 %v397
    %411 = vmatpush.msra.mxu0 %v396
    %412 = vmatpush.msra.mxu0 %v395
    %413 = vmatpush.msra.mxu0 %v394
    %414 = vmatpush.msra.mxu0 %v393
    %415 = vmatpush.msra.mxu0 %v392
    %416 = vmatpush.msra.mxu0 %v391
    %417 = vmatpush.msra.mxu0 %v390
    %418 = vmatpush.msra.mxu0 %v389
    %419 = vmatpush.msra.mxu0 %v388
    %420 = vmatmul.f32.gmra.mxu0 %v385
    %v421 = vpop.f32.mrf.mxu0
    %v422 = vadd.f32 0.0, %v421
    %423 = vdwg.mxu0
    %v425 = vrot.slane %v422, 1
    %v426 = vld [vmem:[%s4] sm:$0x3]
    %v428 = vrot.slane %v426, 1
    %v430 = vsel %vm224, %v422, 0
    %v433 = vsel %vm224, %v386, 0
    %435 = vmatpush.xpose.msra.mxu0 0.0
    %436 = vmatpush.xpose.msra.mxu0 0.0
    %437 = vmatpush.xpose.msra.mxu0 0.0
    %438 = vmatpush.xpose.msra.mxu0 0.0
    %439 = vmatpush.xpose.msra.mxu0 0.0
    %440 = vmatpush.xpose.msra.mxu0 0.0
    %441 = vmatpush.xpose.msra.mxu0 0.0
    %442 = vmatpush.xpose.msra.mxu0 0.0
    %443 = vmatpush.xpose.msra.mxu0 0.0
    %444 = vmatpush.xpose.msra.mxu0 0.0
    %445 = vmatpush.xpose.msra.mxu0 0.0
    %446 = vmatpush.xpose.msra.mxu0 0.0
    %447 = vmatpush.xpose.msra.mxu0 0.0
    %448 = vmatpush.xpose.msra.mxu0 0.0
    %449 = vmatpush.xpose.msra.mxu0 0.0
    %450 = vmatpush.xpose.msra.mxu0 %v433
    %451 = vmatmul.f32.gmra.mxu0 %v430
    %v452 = vpop.f32.mrf.mxu0
    %v453 = vadd.f32 %v426, %v452
    %454 = vdwg.mxu0
    %v455 = vsel %vm224, %v425, 0
    %v458 = vsel %vm224, %v387, 0
    %460 = vmatpush.xpose.msra.mxu0 0.0
    %461 = vmatpush.xpose.msra.mxu0 0.0
    %462 = vmatpush.xpose.msra.mxu0 0.0
    %463 = vmatpush.xpose.msra.mxu0 0.0
    %464 = vmatpush.xpose.msra.mxu0 0.0
    %465 = vmatpush.xpose.msra.mxu0 0.0
    %466 = vmatpush.xpose.msra.mxu0 0.0
    %467 = vmatpush.xpose.msra.mxu0 0.0
    %468 = vmatpush.xpose.msra.mxu0 0.0
    %469 = vmatpush.xpose.msra.mxu0 0.0
    %470 = vmatpush.xpose.msra.mxu0 0.0
    %471 = vmatpush.xpose.msra.mxu0 0.0
    %472 = vmatpush.xpose.msra.mxu0 0.0
    %473 = vmatpush.xpose.msra.mxu0 0.0
    %474 = vmatpush.xpose.msra.mxu0 0.0
    %475 = vmatpush.xpose.msra.mxu0 %v458
    %476 = vmatmul.f32.gmra.mxu0 %v455
    %v477 = vpop.f32.mrf.mxu0
    %v478 = vadd.f32 %v428, %v477
    %479 = vdwg.mxu0
    %vm480 = vcmask 57344
    %v481 = vsel %vm480, %v453, -inf
    %482 = vmax.xlane.f32.xlu0 %v481
    %v483 = vpop.xlane.xlu0 %482
    %v484 = vsel %vm480, %v478, -inf
    %485 = vmax.xlane.f32.xlu0 %v484
    %v486 = vpop.xlane.xlu0 %485
    %v487 = vsub.f32 %v453, %v483
    %v488 = vsub.f32 %v478, %v486
    %v489 = vmul.f32 %v487, 1.442695
    %v490 = vpow.pop %v489
    %v491 = vmul.f32 %v488, 1.442695
    %v492 = vpow.pop %v491
    %v493 = vsel %vm480, %v490, 0.0
    %494 = vadd.xlane.f32.xlu0 %v493
    %v495 = vpop.xlane.xlu0 %494
    %v496 = vsel %vm480, %v492, 0.0
    %497 = vadd.xlane.f32.xlu0 %v496
    %v498 = vpop.xlane.xlu0 %497
    %v499 = vrcp.pop %v495
    %v500 = vrcp.pop %v498
    %v501 = vmul.f32 %v490, %v499
    %v502 = vmul.f32 %v492, %v500
    %vm503 = vcmask 64512
    %v505 = vsel %vm503, %v501, 0
    %507 = vmatpush.msra.mxu0 0.0
    %508 = vmatpush.msra.mxu0 0.0
    %509 = vmatpush.msra.mxu0 0.0
    %510 = vmatpush.msra.mxu0 0.0
    %511 = vmatpush.msra.mxu0 0.0
    %512 = vmatpush.msra.mxu0 0.0
    %513 = vmatpush.msra.mxu0 0.0
    %514 = vmatpush.msra.mxu0 0.0
    %515 = vmatpush.msra.mxu0 0.0
    %516 = vmatpush.msra.mxu0 0.0
    %517 = vmatpush.msra.mxu0 0.0
    %518 = vmatpush.msra.mxu0 0.0
    %519 = vmatpush.msra.mxu0 0.0
    %520 = vmatpush.msra.mxu0 0.0
    %521 = vmatpush.msra.mxu0 0.0
    %522 = vmatpush.msra.mxu0 %v386
    %523 = vmatmul.f32.gmra.mxu0 %v505
    %v524 = vpop.f32.mrf.mxu0
    %v525 = vadd.f32 0.0, %v524
    %526 = vdwg.mxu0
    %v528 = vsel %vm503, %v502, 0
    %530 = vmatpush.msra.mxu0 0.0
    %531 = vmatpush.msra.mxu0 0.0
    %532 = vmatpush.msra.mxu0 0.0
    %533 = vmatpush.msra.mxu0 0.0
    %534 = vmatpush.msra.mxu0 0.0
    %535 = vmatpush.msra.mxu0 0.0
    %536 = vmatpush.msra.mxu0 0.0
    %537 = vmatpush.msra.mxu0 0.0
    %538 = vmatpush.msra.mxu0 0.0
    %539 = vmatpush.msra.mxu0 0.0
    %540 = vmatpush.msra.mxu0 0.0
    %541 = vmatpush.msra.mxu0 0.0
    %542 = vmatpush.msra.mxu0 0.0
    %543 = vmatpush.msra.mxu0 0.0
    %544 = vmatpush.msra.mxu0 0.0
    %545 = vmatpush.msra.mxu0 %v387
    %546 = vmatmul.f32.gmra.mxu0 %v528
    %v547 = vpop.f32.mrf.mxu0
    %v548 = vadd.f32 0.0, %v547
    %549 = vdwg.mxu0
    %v550 = vld [vmem:[%s9] sm:$0xff]
    %v551 = vld [vmem:[%s9 + $0x8] sm:$0xff]
    %v552 = vld [vmem:[%s9 + $0x10] sm:$0xff]
    %v553 = vld [vmem:[%s9 + $0x18] sm:$0xff]
    %v554 = vld [vmem:[%s9 + $0x20] sm:$0xff]
    %v555 = vld [vmem:[%s9 + $0x28] sm:$0xff]
    %v556 = vld [vmem:[%s9 + $0x30] sm:$0xff]
    %v557 = vld [vmem:[%s9 + $0x38] sm:$0xff]
    %v558 = vld [vmem:[%s9 + $0x40] sm:$0xff]
    %v559 = vld [vmem:[%s9 + $0x48] sm:$0xff]
    %v560 = vld [vmem:[%s9 + $0x50] sm:$0xff]
    %v561 = vld [vmem:[%s9 + $0x58] sm:$0xff]
    %v562 = vld [vmem:[%s9 + $0x60] sm:$0xff]
    %v563 = vld [vmem:[%s9 + $0x68] sm:$0xff]
    %v564 = vld [vmem:[%s9 + $0x70] sm:$0xff]
    %v565 = vld [vmem:[%s9 + $0x78] sm:$0xff]
    %v566 = vld [vmem:[%s10] sm:$0xff]
    %v567 = vld [vmem:[%s10 + $0x8] sm:$0xff]
    %v568 = vld [vmem:[%s10 + $0x10] sm:$0xff]
    %v569 = vld [vmem:[%s10 + $0x18] sm:$0xff]
    %v572 = vrot.slane %v548, 7
    %vm573 = vcmask 1041409
    %v574 = vsel %vm573, %v572, %v525
    %v575 = vsel %vm224, %v574, 0
    %577 = vmatpush.msra.mxu0 0.0
    %578 = vmatpush.msra.mxu0 0.0
    %579 = vmatpush.msra.mxu0 0.0
    %580 = vmatpush.msra.mxu0 0.0
    %581 = vmatpush.msra.mxu0 0.0
    %582 = vmatpush.msra.mxu0 0.0
    %583 = vmatpush.msra.mxu0 0.0
    %584 = vmatpush.msra.mxu0 0.0
    %585 = vmatpush.msra.mxu0 0.0
    %586 = vmatpush.msra.mxu0 0.0
    %587 = vmatpush.msra.mxu0 0.0
    %588 = vmatpush.msra.mxu0 0.0
    %589 = vmatpush.msra.mxu0 %v569
    %590 = vmatpush.msra.mxu0 %v568
    %591 = vmatpush.msra.mxu0 %v567
    %592 = vmatpush.msra.mxu0 %v566
    %593 = vmatmul.f32.gmra.mxu0 %v575
    %v594 = vpop.f32.mrf.mxu0
    %v595 = vadd.f32 0.0, %v594
    %596 = vdwg.mxu0
    %597 = vmatpush.msra.mxu0 %v565
    %598 = vmatpush.msra.mxu0 %v564
    %599 = vmatpush.msra.mxu0 %v563
    %600 = vmatpush.msra.mxu0 %v562
    %601 = vmatpush.msra.mxu0 %v561
    %602 = vmatpush.msra.mxu0 %v560
    %603 = vmatpush.msra.mxu0 %v559
    %604 = vmatpush.msra.mxu0 %v558
    %605 = vmatpush.msra.mxu0 %v557
    %606 = vmatpush.msra.mxu0 %v556
    %607 = vmatpush.msra.mxu0 %v555
    %608 = vmatpush.msra.mxu0 %v554
    %609 = vmatpush.msra.mxu0 %v553
    %610 = vmatpush.msra.mxu0 %v552
    %611 = vmatpush.msra.mxu0 %v551
    %612 = vmatpush.msra.mxu0 %v550
    %613 = vmatmul.f32.gmra.mxu0 %v385
    %v614 = vpop.f32.mrf.mxu0
    %v615 = vadd.f32 %v595, %v614
    %616 = vdwg.mxu0
    %v617 = vld [vmem:[%s11] sm:$0x1]
    %v619 = vperm.slane %v617, 0
    %v621 = vadd.f32 %v615, %v619
    %622 = vst [vmem:[#allocation5] sm:$0x3] %v621
    %623 = vst [vmem:[#allocation6] sm:$0x3] %v385
    %624 = vst [vmem:[#allocation8] sm:$0x3] %v383
    // Predicated region
    $region54: #{_decoder_forward.1} parent=1 // pred_check
      _
    $region55: #{_decoder_forward.1} parent=1 // pred_check_branch
      %626 = sbr.rel (0) target = $region57
    $region56: #{_decoder_forward.1} parent=1 // pred_region
      %628 = vsyncadd [#allocation4], 0
      %s630 = sshll.u32 [#allocation5], 4
      %s631 = int_to_ptr.vmem [resolvable:$true] %s630
      %s632 = sshll.u32 %s12, 4
      %s633 = int_to_ptr.hbm [resolvable:$true] %s632
      %635 = dma.vmem_to_hbm [thread:$0]  %s631, 32, %s633, [#allocation4]
    $region57: #{_decoder_forward.1} parent=1 // pred_fallthru
      _
    // Predicated region
    $region58: #{_decoder_forward.1} parent=1 // pred_check
      _
    $region59: #{_decoder_forward.1} parent=1 // pred_check_branch
      %637 = sbr.rel (0) target = $region61
    $region60: #{_decoder_forward.1} parent=1 // pred_region
      %639 = vsyncadd [#allocation7], 0
      %s641 = sshll.u32 [#allocation6], 4
      %s642 = int_to_ptr.vmem [resolvable:$true] %s641
      %s643 = sshll.u32 %s13, 4
      %s644 = int_to_ptr.hbm [resolvable:$true] %s643
      %646 = dma.vmem_to_hbm [thread:$0]  %s642, 32, %s644, [#allocation7]
    $region61: #{_decoder_forward.1} parent=1 // pred_fallthru
      _
    // Predicated region
    $region62: #{_decoder_forward.1} parent=1 // pred_check
      _
    $region63: #{_decoder_forward.1} parent=1 // pred_check_branch
      %648 = sbr.rel (0) target = $region65
    $region64: #{_decoder_forward.1} parent=1 // pred_region
      %650 = vsyncadd [#allocation7], 0
      %s652 = sshll.u32 [#allocation8], 4
      %s653 = int_to_ptr.vmem [resolvable:$true] %s652
      %s654 = sshll.u32 %s14, 4
      %s655 = int_to_ptr.hbm [resolvable:$true] %s654
      %657 = dma.vmem_to_hbm [thread:$0]  %s653, 32, %s655, [#allocation7]
    $region65: #{_decoder_forward.1} parent=1 // pred_fallthru
      _
    // Predicated region
    $region66: #{_decoder_forward.1} parent=1 // pred_check
      _
    $region67: #{_decoder_forward.1} parent=1 // pred_check_branch
      %659 = sbr.rel (0) target = $region69
    $region68: #{_decoder_forward.1} parent=1 // pred_region
      %661 = dma.done [#allocation4], 32
    $region69: #{_decoder_forward.1} parent=1 // pred_fallthru
      _
    // Predicated region
    $region70: #{_decoder_forward.1} parent=1 // pred_check
      _
    $region71: #{_decoder_forward.1} parent=1 // pred_check_branch
      %663 = sbr.rel (0) target = $region73
    $region72: #{_decoder_forward.1} parent=1 // pred_region
      %665 = dma.done [#allocation7], 32
    $region73: #{_decoder_forward.1} parent=1 // pred_fallthru
      _
    // Predicated region
    $region74: #{_decoder_forward.1} parent=1 // pred_check
      _
    $region75: #{_decoder_forward.1} parent=1 // pred_check_branch
      %667 = sbr.rel (0) target = $region77
    $region76: #{_decoder_forward.1} parent=1 // pred_region
      %669 = dma.done [#allocation7], 32
    $region77: #{_decoder_forward.1} parent=1 // pred_fallthru
      _
    %670 = vsyncpa [#allocation3], 1
    %671 = vsyncpa [#allocation4], 1
    %672 = vsyncpa [#allocation7], 1

</llo_original>
